<compile_context>
chip_gen: v7x
topology: tpu7x:2x2x1
jax: 0.10.0
libtpu: 0.0.40
codegen_flags: <defaults>
</compile_context>

<pallas_src>
import functools

import jax
import jax.numpy as jnp
from jax.experimental import pallas as pl
from jax.experimental.pallas import tpu as pltpu


# ----------------------------------------------------------------------------
# helpers
# ----------------------------------------------------------------------------
def _ceil_to(v, m):
    return ((v + m - 1) // m) * m


def _vmem_capacity_bytes():
    try:
        return int(pltpu.get_tpu_info().vmem_capacity_bytes)
    except Exception:
        return 64 << 20  # conservative (v7x per-TC VMEM)


def _apply_activation(y, activation, *, in_kernel):
    if activation == "relu":
        return jnp.maximum(y, 0.0)
    if activation == "lrelu":
        return jnp.where(y >= 0.0, y, 0.2 * y)
    if activation == "tanh":
        return jnp.tanh(y)
    if activation == "sigmoid":
        if in_kernel:
            # exp on EUP, approx reciprocal on EUP -> no VPU Newton iterations.
            return pl.reciprocal(1.0 + jnp.exp(-y), approx=True)
        return 1.0 / (1.0 + jnp.exp(-y))
    if activation == "selu":
        alpha = 1.6732632423543772
        scale = 1.0507009873554805
        return scale * jnp.where(y > 0.0, y, alpha * (jnp.exp(y) - 1.0))
    if activation == "none":
        return y
    # TODO(synk): 'prelu' (learnable slope parameter) not implemented.
    raise ValueError(f"unsupported activation: {activation}")


# ----------------------------------------------------------------------------
# Fused LinearBlock kernel: y = act(norm(x @ W^T + b))
# ----------------------------------------------------------------------------
def _linear_block_kernel(*refs, norm, activation, k_grid):
    if norm == "ln":
        x_ref, w_ref, b_ref, g_ref, bb_ref, o_ref = refs
    else:
        x_ref, w_ref, b_ref, o_ref = refs
        g_ref = bb_ref = None

    def epilogue(y):
        y = y + b_ref[...]
        if norm == "ln":
            # Custom LayerNorm: per-row mean / unbiased std over all features
            # (full-N block => no masking needed), eps added to the std.
            n = y.shape[-1]
            mean = jnp.mean(y, axis=-1, keepdims=True)
            xc = y - mean
            var = jnp.sum(xc * xc, axis=-1, keepdims=True) * (1.0 / (n - 1))
            inv = pl.reciprocal(jnp.sqrt(var) + 1e-5, approx=True)
            y = xc * inv
            y = y * g_ref[...] + bb_ref[...]
        # TODO(synk): norm='bn'/'in' (batch/instance norm) and norm='sn'
        # (spectral norm on the weight) are not implemented here.
        return _apply_activation(y, activation, in_kernel=True)

    if k_grid == 1:
        # Fast path: the whole reduction fits one block — no accumulator,
        # no pl.when gating, no per-K-step overhead.
        y = jnp.dot(x_ref[...].astype(jnp.bfloat16), w_ref[...],
                    preferred_element_type=jnp.float32)
        o_ref[...] = epilogue(y).astype(o_ref.dtype)
    else:
        k = pl.program_id(1)

        @pl.when(k == 0)
        def _():
            o_ref[...] = jnp.zeros_like(o_ref)

        # Accumulate directly into the resident f32 output block.
        o_ref[...] += jnp.dot(x_ref[...].astype(jnp.bfloat16), w_ref[...],
                              preferred_element_type=jnp.float32)

        @pl.when(k == k_grid - 1)
        def _():
            o_ref[...] = epilogue(o_ref[...]).astype(o_ref.dtype)


def linear_block(x, weight, bias, gamma=None, beta=None,
                 norm="none", activation="relu"):
    """LinearBlock forward.

    x:      (M, K) f32
    weight: (N, K) f32  (PyTorch nn.Linear layout: (out_features, in_features))
    bias:   (N,)   f32
    gamma/beta: (N,) f32, used only when norm == 'ln'.
    """
    M, K = x.shape
    N, K_w = weight.shape
    assert K == K_w
    if norm not in ("none", "ln"):
        # TODO(synk): 'bn' / 'in' / 'sn' norms not implemented.
        raise NotImplementedError(f"norm={norm!r} not implemented")
    if norm == "ln" and N < 2:
        raise ValueError("LayerNorm needs >= 2 features (unbiased std).")

    cap = _vmem_capacity_bytes()
    big_vmem = cap >= (96 << 20)          # v5e/v6e (128 MiB) vs v7x (64 MiB)

    # ---- tile selection -----------------------------------------------------
    # Rows: single block when small (no padding, no output slice); otherwise
    # tile — tm=256 keeps >=2 row blocks for v7x megacore at moderate M.
    if M <= 256:
        tm, m_pad = M, M
    else:
        tm = 512 if (big_vmem and M >= 1024 and M % 512 == 0) else 256
        m_pad = _ceil_to(M, tm)

    # Reduction: single block when it fits, otherwise tile (bigger tk when the
    # chip has 128 MiB VMEM).
    if K <= 1024:
        tk, k_pad = K, K
    else:
        tk = 1024 if big_vmem else 512
        k_pad = _ceil_to(K, tk)

    # Features: single full-N block (the fused LayerNorm needs the whole row).
    # TODO(synk): add an N grid axis (tn~256) for very large N when norm!='ln'.

    # ---- operand layout (avoid per-call HBM pad/cast passes where possible) --
    x_in = x                              # f32 in HBM; bf16 cast happens in-kernel
    if (m_pad != M) or (k_pad != K):
        x_in = jnp.zeros((m_pad, k_pad), x.dtype).at[:M, :K].set(x)

    w_t = weight.T.astype(jnp.bfloat16)   # (K, N) bf16 MXU operand (one small pass)
    if k_pad != K:
        w_t = jnp.zeros((k_pad, N), jnp.bfloat16).at[:K, :].set(w_t)

    b_in = bias.reshape(1, N).astype(jnp.float32)

    k_grid = k_pad // tk
    grid = (m_pad // tm,) if k_grid == 1 else (m_pad // tm, k_grid)

    if k_grid == 1:
        x_map = lambda i: (i, 0)
        w_map = lambda i: (0, 0)
        v_map = lambda i: (0, 0)
        o_map = lambda i: (i, 0)
        dims = ("parallel",)
    else:
        x_map = lambda i, k: (i, k)
        w_map = lambda i, k: (k, 0)
        v_map = lambda i, k: (0, 0)
        o_map = lambda i, k: (i, 0)       # resident across K -> in-place accumulator
        dims = ("parallel", "arbitrary")

    in_specs = [
        pl.BlockSpec((tm, tk), x_map),
        pl.BlockSpec((tk, N), w_map),
        pl.BlockSpec((1, N), v_map),
    ]
    args = [x_in, w_t, b_in]
    if norm == "ln":
        if gamma is None:
            gamma = jnp.ones((N,), jnp.float32)
        if beta is None:
            beta = jnp.zeros((N,), jnp.float32)
        in_specs += [pl.BlockSpec((1, N), v_map), pl.BlockSpec((1, N), v_map)]
        args += [gamma.reshape(1, N).astype(jnp.float32),
                 beta.reshape(1, N).astype(jnp.float32)]

    # ---- explicit VMEM budget (generation-aware cap) --------------------------
    vmem_bytes = (2 * tm * tk * 4          # x blocks (f32, double-buffered)
                  + 2 * tk * N * 2         # w blocks (bf16, double-buffered)
                  + 2 * tm * N * 4         # output block (f32, resident + writeback)
                  + 6 * N * 4)             # bias / gamma / beta rows
    vmem_limit = int(min(vmem_bytes + (8 << 20), (cap * 5) // 8))

    out = pl.pallas_call(
        functools.partial(_linear_block_kernel, norm=norm,
                          activation=activation, k_grid=k_grid),
        grid=grid,
        in_specs=in_specs,
        out_specs=pl.BlockSpec((tm, N), o_map),
        out_shape=jax.ShapeDtypeStruct((m_pad, N), jnp.float32),
        compiler_params=pltpu.CompilerParams(
            dimension_semantics=dims, vmem_limit_bytes=vmem_limit),
    )(*args)

    return out if m_pad == M else out[:M]


# ----------------------------------------------------------------------------
# pure-JAX reference (f32) for a sanity check
# ----------------------------------------------------------------------------
def _ref_linear_block(x, weight, bias, gamma, beta, norm, activation):
    y = x @ weight.T + bias
    if norm == "ln":
        mean = jnp.mean(y, axis=1, keepdims=True)
        std = jnp.std(y, axis=1, keepdims=True, ddof=1)   # unbiased, eps on std
        y = (y - mean) / (std + 1e-5)
        y = y * gamma + beta
    return _apply_activation(y, activation, in_kernel=False)


if __name__ == "__main__":
    key = jax.random.PRNGKey(0)
    kx, kw, kb, kg, kx2, kw2, kb2 = jax.random.split(key, 7)

    # --- small LinearBlock shapes (fast path: single K block, no padding) ----
    M, K, N = 512, 96, 48
    x = jax.random.normal(kx, (M, K), jnp.float32)
    weight = 0.05 * jax.random.normal(kw, (N, K), jnp.float32)
    bias = 0.01 * jax.random.normal(kb, (N,), jnp.float32)
    gamma = jax.random.uniform(kg, (N,), jnp.float32)     # LayerNorm gamma ~ U(0,1)
    beta = jnp.zeros((N,), jnp.float32)

    # Default LinearBlock config: norm='none', activation='relu'.
    y1 = linear_block(x, weight, bias, norm="none", activation="relu")
    # LinearBlock with the custom LayerNorm and tanh.
    y2 = linear_block(x, weight, bias, gamma=gamma, beta=beta,
                      norm="ln", activation="tanh")

    # --- larger-K shape exercising the K-tiled accumulate-into-output path ----
    Mb, Kb, Nb = 512, 2048, 256
    xb = jax.random.normal(kx2, (Mb, Kb), jnp.float32)
    wb = 0.02 * jax.random.normal(kw2, (Nb, Kb), jnp.float32)
    bb = 0.01 * jax.random.normal(kb2, (Nb,), jnp.float32)
    y3 = linear_block(xb, wb, bb, norm="none", activation="sigmoid")

    y1, y2, y3 = jax.block_until_ready((y1, y2, y3))

    assert y1.shape == (M, N) and y2.shape == (M, N) and y3.shape == (Mb, Nb)
    assert all(bool(jnp.all(jnp.isfinite(v))) for v in (y1, y2, y3))

    # Reference on bf16-rounded operands (what the MXU actually sees).
    def bf(v):
        return v.astype(jnp.bfloat16).astype(jnp.float32)

    r1 = _ref_linear_block(bf(x), bf(weight), bias, gamma, beta, "none", "relu")
    r2 = _ref_linear_block(bf(x), bf(weight), bias, gamma, beta, "ln", "tanh")
    r3 = _ref_linear_block(bf(xb), bf(wb), bb, None, None, "none", "sigmoid")

    assert float(jnp.max(jnp.abs(y1 - r1))) < 5e-2, float(jnp.max(jnp.abs(y1 - r1)))
    assert float(jnp.max(jnp.abs(y2 - r2))) < 5e-2, float(jnp.max(jnp.abs(y2 - r2)))
    assert float(jnp.max(jnp.abs(y3 - r3))) < 5e-2, float(jnp.max(jnp.abs(y3 - r3)))

    print("KERNEL_OK")
</pallas_src>

<mosaic_0001>
module attributes {stable_mosaic.version = 11 : i64} {
  func.func @_linear_block_kernel(%arg0: i32, %arg1: memref<256x96xf32, #tpu.memory_space<vmem>>, %arg2: memref<96x48xbf16, #tpu.memory_space<vmem>>, %arg3: memref<1x48xf32, #tpu.memory_space<vmem>>, %arg4: memref<256x48xf32, #tpu.memory_space<vmem>>) attributes {dimension_semantics = [#tpu.dimension_semantics<parallel>], iteration_bounds = array<i64: 2>, scalar_prefetch = 0 : i64, scratch_operands = 0 : i64, tpu.core_type = #tpu.core_type<tc>, window_params = [{transform_indices = @transform_0, window_bounds = array<i64: 256, 96>}, {pipeline_mode = #tpu.pipeline_mode<synchronous>, transform_indices = @transform_1, window_bounds = array<i64: 96, 48>}, {pipeline_mode = #tpu.pipeline_mode<synchronous>, transform_indices = @transform_2, window_bounds = array<i64: 1, 48>}, {transform_indices = @transform_3, window_bounds = array<i64: 256, 48>}]} {
    %c0 = arith.constant 0 : index
    %c0_0 = arith.constant 0 : index
    %0 = vector.load %arg1[%c0, %c0_0] : memref<256x96xf32, #tpu.memory_space<vmem>>, vector<256x96xf32>
    %1 = arith.truncf %0 : vector<256x96xf32> to vector<256x96xbf16>
    %c0_1 = arith.constant 0 : index
    %c0_2 = arith.constant 0 : index
    %2 = vector.load %arg2[%c0_1, %c0_2] : memref<96x48xbf16, #tpu.memory_space<vmem>>, vector<96x48xbf16>
    %cst = arith.constant dense<0.000000e+00> : vector<256x48xf32>
    %3 = tpu.matmul %1, %2, %cst {dimension_numbers = #tpu.dot_dimension_numbers<[1], [0], [0], [1], [0, 0, 1, 1], [], []>} : vector<256x96xbf16>, vector<96x48xbf16>, vector<256x48xf32> -> vector<256x48xf32>
    %c0_3 = arith.constant 0 : index
    %c0_4 = arith.constant 0 : index
    %4 = vector.load %arg3[%c0_3, %c0_4] : memref<1x48xf32, #tpu.memory_space<vmem>>, vector<1x48xf32>
    %5 = vector.broadcast %4 : vector<1x48xf32> to vector<256x48xf32>
    %6 = arith.addf %3, %5 : vector<256x48xf32>
    %cst_5 = arith.constant 0.000000e+00 : f32
    %7 = vector.broadcast %cst_5 : f32 to vector<256x48xf32>
    %8 = arith.maximumf %6, %7 : vector<256x48xf32>
    %c0_6 = arith.constant 0 : index
    %c0_7 = arith.constant 0 : index
    %9 = vector.load %arg4[%c0_6, %c0_7] : memref<256x48xf32, #tpu.memory_space<vmem>>, vector<256x48xf32>
    tpu.vector_store %arg4[%c0_6, %c0_7], %8 {strides = array<i32>} : memref<256x48xf32, #tpu.memory_space<vmem>>, vector<256x48xf32>,
    return
  }
  func.func @transform_0(%arg0: i32) -> (i32, i32) {
    %c0_i32 = arith.constant 0 : i32
    %c0_i32_0 = arith.constant 0 : i32
    return %arg0, %c0_i32 : i32, i32
  }
  func.func @transform_1(%arg0: i32) -> (i32, i32) {
    %c0_i32 = arith.constant 0 : i32
    %c0_i32_0 = arith.constant 0 : i32
    %c0_i32_1 = arith.constant 0 : i32
    return %c0_i32, %c0_i32_0 : i32, i32
  }
  func.func @transform_2(%arg0: i32) -> (i32, i32) {
    %c0_i32 = arith.constant 0 : i32
    %c0_i32_0 = arith.constant 0 : i32
    %c0_i32_1 = arith.constant 0 : i32
    return %c0_i32, %c0_i32_0 : i32, i32
  }
  func.func @transform_3(%arg0: i32) -> (i32, i32) {
    %c0_i32 = arith.constant 0 : i32
    %c0_i32_0 = arith.constant 0 : i32
    return %arg0, %c0_i32 : i32, i32
  }
}

</mosaic_0001>

<llo_original>
// kernel: tpu_custom_call.1
$region0: #{tpu_custom_call.1}
  #allocation0 [shape = 'u32[]', space=smem, size = 0x4, offset = 0x4, fixed_abs, tag = 'smem constant byte address 0x4 - core index']
  #allocation1 [shape = 'u32[144,128]{1,0:T(1,128)}', space=vmem, size = 0x12000, scoped, tag = 'internal scratch']
  %s0 = inlined_call_operand.vmem [shape: f32[512,96], index: 0, kind: input, shape index: {}]
  %s1 = inlined_call_operand.vmem [shape: bf16[96,48], index: 1, kind: input, shape index: {}]
  %s2 = inlined_call_operand.vmem [shape: f32[1,48], index: 2, kind: input, shape index: {}]
  %s3 = inlined_call_operand.vmem [shape: f32[512,48], index: 3, kind: output, shape index: {}]
  %s4 = sld [smem:[#allocation0]]
  $region45: #{tpu_custom_call.1} parent=0
    _
  %s6 = ssub.s32 1, %s4
  %s7 = scalar_select 0, %s6, %s4
  loop: start=0, step=1, limit=4
  $region2: #{tpu_custom_call.1} parent=0 // loop_pre_header
    _
  $region3: #{tpu_custom_call.1} parent=0 // loop_header
    %s9 = sphi 0, %s13
    %p10 = scmp.ge.s32.totalorder %s9, 4
    %s19 = sphi 0, %s21
    %s22 = sphi 0, %s19
    %s23 = sphi 0, %s22
    %s39 = sphi 0, %s23
    %s43 = sphi 0, %s43
    %s45 = sphi 0, %s43
    %s46 = sphi 0, %s45
    %s60 = sphi 0, %s46
    %s64 = sphi 0, %s64
    %s66 = sphi 0, %s64
    %s67 = sphi 0, %s66
    %s81 = sphi 0, %s67
    %s87 = sphi 0, %s89
    %s90 = sphi 0, %s87
    %s91 = sphi 0, %s90
    %s107 = sphi 0, %s91
  $region4: #{tpu_custom_call.1} parent=0 // loop_header_branch
    %12 = sbr.rel (%p10) target = $region8
  $region5: #{tpu_custom_call.1} parent=0 // loop_body
    %s14 = ssub.s32 %s9, 1
    %s15 = ssub.s32 %s9, 2
    %s16 = sadd.s32 %s9, 1
    %s17 = ssub.s32 %s9, %s16
    %p18 = scmp.eq.s32.totalorder %s17, 0
    %s20 = sadd.s32 %s19, 1
    %s21 = scalar_select %p18, %s19, %s20
    %p24 = pneg %p18
    %p25 = scmp.eq.s32.totalorder %s9, 1
    %p26 = por %p24, %p25
    %p27 = scmp.ne.s32.totalorder %s19, %s22
    %p28 = scmp.eq.s32.totalorder %s9, 0
    %p29 = por %p27, %p28
    %p30 = scmp.ne.s32.totalorder %s19, %s22
    %p31 = scmp.eq.s32.totalorder %s14, 1
    %p32 = por %p30, %p31
    %p33 = scmp.ne.s32.totalorder %s22, %s23
    %p34 = scmp.eq.s32.totalorder %s14, 0
    %p35 = por %p33, %p34
    %p36 = scmp.ne.s32.totalorder %s22, %s23
    %p37 = scmp.eq.s32.totalorder %s15, 1
    %p38 = por %p36, %p37
    %p40 = scmp.ne.s32.totalorder %s23, %s39
    %p41 = scmp.eq.s32.totalorder %s15, 0
    %p42 = por %p40, %p41
    %s44 = sadd.s32 %s43, 1
    %p47 = scmp.eq.s32.totalorder %s9, 1
    %p48 = scmp.ne.s32.totalorder %s43, %s45
    %p49 = scmp.eq.s32.totalorder %s9, 0
    %p50 = por %p48, %p49
    %p51 = scmp.ne.s32.totalorder %s43, %s45
    %p52 = scmp.eq.s32.totalorder %s14, 1
    %p53 = por %p51, %p52
    %p54 = scmp.ne.s32.totalorder %s45, %s46
    %p55 = scmp.eq.s32.totalorder %s14, 0
    %p56 = por %p54, %p55
    %p57 = scmp.ne.s32.totalorder %s45, %s46
    %p58 = scmp.eq.s32.totalorder %s15, 1
    %p59 = por %p57, %p58
    %p61 = scmp.ne.s32.totalorder %s46, %s60
    %p62 = scmp.eq.s32.totalorder %s15, 0
    %p63 = por %p61, %p62
    %s65 = sadd.s32 %s64, 1
    %p68 = scmp.eq.s32.totalorder %s9, 1
    %p69 = scmp.ne.s32.totalorder %s64, %s66
    %p70 = scmp.eq.s32.totalorder %s9, 0
    %p71 = por %p69, %p70
    %p72 = scmp.ne.s32.totalorder %s64, %s66
    %p73 = scmp.eq.s32.totalorder %s14, 1
    %p74 = por %p72, %p73
    %p75 = scmp.ne.s32.totalorder %s66, %s67
    %p76 = scmp.eq.s32.totalorder %s14, 0
    %p77 = por %p75, %p76
    %p78 = scmp.ne.s32.totalorder %s66, %s67
    %p79 = scmp.eq.s32.totalorder %s15, 1
    %p80 = por %p78, %p79
    %p82 = scmp.ne.s32.totalorder %s67, %s81
    %p83 = scmp.eq.s32.totalorder %s15, 0
    %p84 = por %p82, %p83
    %s85 = ssub.s32 %s9, %s16
    %p86 = scmp.eq.s32.totalorder %s85, 0
    %s88 = sadd.s32 %s87, 1
    %s89 = scalar_select %p86, %s87, %s88
    %p92 = pneg %p86
    %p93 = scmp.eq.s32.totalorder %s9, 1
    %p94 = por %p92, %p93
    %p95 = scmp.ne.s32.totalorder %s87, %s90
    %p96 = scmp.eq.s32.totalorder %s9, 0
    %p97 = por %p95, %p96
    %p98 = scmp.ne.s32.totalorder %s87, %s90
    %p99 = scmp.eq.s32.totalorder %s14, 1
    %p100 = por %p98, %p99
    %p101 = scmp.ne.s32.totalorder %s90, %s91
    %p102 = scmp.eq.s32.totalorder %s14, 0
    %p103 = por %p101, %p102
    %p104 = scmp.ne.s32.totalorder %s90, %s91
    %p105 = scmp.eq.s32.totalorder %s15, 1
    %p106 = por %p104, %p105
    %p108 = scmp.ne.s32.totalorder %s91, %s107
    %p109 = scmp.eq.s32.totalorder %s15, 0
    %p110 = por %p108, %p109
    %p111 = scmp.le.s32.totalorder 1, %s9
    %p112 = scmp.lt.s32.totalorder %s9, 3
    %p113 = pnand %p111, %p112
    %p114 = pneg %p113
    // Predicated region
    $region9: #{tpu_custom_call.1} parent=5 // pred_check
      _
    $region10: #{tpu_custom_call.1} parent=5 // pred_check_branch
      %116 = sbr.rel (%p113) target = $region12
    $region11: #{tpu_custom_call.1} parent=5 // pred_region
      %s117 = ssub.s32 %s9, 1
      // Predicated region
      $region13: #{tpu_custom_call.1} parent=11 // pred_check
        %p118 = pneg %p56
      $region14: #{tpu_custom_call.1} parent=11 // pred_check_branch
        %120 = sbr.rel (%p118) target = $region16
      $region15: #{tpu_custom_call.1} parent=11 // pred_region
        _
      $region16: #{tpu_custom_call.1} parent=11 // pred_fallthru
        _
      // Predicated region
      $region17: #{tpu_custom_call.1} parent=11 // pred_check
        %p121 = pneg %p77
      $region18: #{tpu_custom_call.1} parent=11 // pred_check_branch
        %123 = sbr.rel (%p121) target = $region20
      $region19: #{tpu_custom_call.1} parent=11 // pred_region
        _
      $region20: #{tpu_custom_call.1} parent=11 // pred_fallthru
        _
    $region12: #{tpu_custom_call.1} parent=5 // pred_fallthru
      _
    %p124 = scmp.lt.s32.totalorder %s9, 2
    // Predicated region
    $region21: #{tpu_custom_call.1} parent=5 // pred_check
      %p125 = pneg %p124
    $region22: #{tpu_custom_call.1} parent=5 // pred_check_branch
      %127 = sbr.rel (%p125) target = $region24
    $region23: #{tpu_custom_call.1} parent=5 // pred_region
      // Predicated region
      $region25: #{tpu_custom_call.1} parent=23 // pred_check
        %p128 = pneg %p29
      $region26: #{tpu_custom_call.1} parent=23 // pred_check_branch
        %130 = sbr.rel (%p128) target = $region28
      $region27: #{tpu_custom_call.1} parent=23 // pred_region
        %s131 = smul.u32 32, %s9
        %p132 = scmp.lt.s32.totalorder %s131, 63
        %s133 = scalar_select %p132, %s131, 63
        %s134 = smul.addr %s133, 8
        %s135 = scalar_lea.vmem %s0, %s134
        %s136 = smul.u32 32, %s9
      $region28: #{tpu_custom_call.1} parent=23 // pred_fallthru
        _
    $region24: #{tpu_custom_call.1} parent=5 // pred_fallthru
      _
    %p137 = scmp.le.s32.totalorder 1, %s9
    %p138 = scmp.lt.s32.totalorder %s9, 3
    %p139 = pnand %p137, %p138
    %p140 = pneg %p139
    // Predicated region
    $region29: #{tpu_custom_call.1} parent=5 // pred_check
      _
    $region30: #{tpu_custom_call.1} parent=5 // pred_check_branch
      %142 = sbr.rel (%p139) target = $region32
    $region31: #{tpu_custom_call.1} parent=5 // pred_region
      %s143 = ssub.s32 %s9, 1
      %s144 = smul.u32 32, %s14
      %p145 = scmp.lt.s32.totalorder %s144, 63
      %s146 = scalar_select %p145, %s144, 63
      %s147 = smul.addr %s146, 8
      %s148 = scalar_lea.vmem %s0, %s147
      %p149 = pneg %p35
      %p150 = pneg %p32
      %p151 = pneg %p56
      %p152 = pneg %p53
      %p153 = pneg %p77
      %p154 = pneg %p74
      %p155 = pneg %p103
      %p156 = pneg %p100
      %s157 = smul.u32 32, %s14
      %p158 = scmp.lt.s32.totalorder %s157, 63
      %s159 = scalar_select %p158, %s157, 63
      %s160 = smul.addr %s159, 8
      %s161 = scalar_lea.vmem %s3, %s160
      %s162 = smul.u32 32, %s14
      %p163 = scmp.lt.s32.totalorder %s162, 63
      %s164 = scalar_select %p163, %s162, 63
      %s165 = smul.addr %s164, 8
      %s166 = scalar_lea.vmem %s0, %s165
      %s167 = smul.u32 32, %s14
      %s168 = smul.u32 32, %s14
      %p169 = scmp.lt.s32.totalorder %s168, 63
      %s170 = scalar_select %p169, %s168, 63
      %s171 = smul.addr %s170, 8
      %s172 = scalar_lea.vmem %s3, %s171
      %s173 = smul.u32 32, %s14
      %v175 = vld [vmem:[%s166] sm:$0xff]
      %v176 = vld [vmem:[%s166 + $0x8] sm:$0xff]
      %v177 = vld [vmem:[%s166 + $0x10] sm:$0xff]
      %v178 = vld [vmem:[%s166 + $0x18] sm:$0xff]
      %v179 = vld [vmem:[%s166 + $0x20] sm:$0xff]
      %v180 = vld [vmem:[%s166 + $0x28] sm:$0xff]
      %v181 = vld [vmem:[%s166 + $0x30] sm:$0xff]
      %v182 = vld [vmem:[%s166 + $0x38] sm:$0xff]
      %v183 = vld [vmem:[%s166 + $0x40] sm:$0xff]
      %v184 = vld [vmem:[%s166 + $0x48] sm:$0xff]
      %v185 = vld [vmem:[%s166 + $0x50] sm:$0xff]
      %v186 = vld [vmem:[%s166 + $0x58] sm:$0xff]
      %v187 = vld [vmem:[%s166 + $0x60] sm:$0xff]
      %v188 = vld [vmem:[%s166 + $0x68] sm:$0xff]
      %v189 = vld [vmem:[%s166 + $0x70] sm:$0xff]
      %v190 = vld [vmem:[%s166 + $0x78] sm:$0xff]
      %v191 = vld [vmem:[%s166 + $0x80] sm:$0xff]
      %v192 = vld [vmem:[%s166 + $0x88] sm:$0xff]
      %v193 = vld [vmem:[%s166 + $0x90] sm:$0xff]
      %v194 = vld [vmem:[%s166 + $0x98] sm:$0xff]
      %v195 = vld [vmem:[%s166 + $0xa0] sm:$0xff]
      %v196 = vld [vmem:[%s166 + $0xa8] sm:$0xff]
      %v197 = vld [vmem:[%s166 + $0xb0] sm:$0xff]
      %v198 = vld [vmem:[%s166 + $0xb8] sm:$0xff]
      %v199 = vld [vmem:[%s166 + $0xc0] sm:$0xff]
      %v200 = vld [vmem:[%s166 + $0xc8] sm:$0xff]
      %v201 = vld [vmem:[%s166 + $0xd0] sm:$0xff]
      %v202 = vld [vmem:[%s166 + $0xd8] sm:$0xff]
      %v203 = vld [vmem:[%s166 + $0xe0] sm:$0xff]
      %v204 = vld [vmem:[%s166 + $0xe8] sm:$0xff]
      %v205 = vld [vmem:[%s166 + $0xf0] sm:$0xff]
      %v206 = vld [vmem:[%s166 + $0xf8] sm:$0xff]
      %v207 = vpack.c.bf16 %v176, %v175
      %v208 = vpack.c.bf16 %v178, %v177
      %v209 = vpack.c.bf16 %v180, %v179
      %v210 = vpack.c.bf16 %v182, %v181
      %v211 = vpack.c.bf16 %v184, %v183
      %v212 = vpack.c.bf16 %v186, %v185
      %v213 = vpack.c.bf16 %v188, %v187
      %v214 = vpack.c.bf16 %v190, %v189
      %v215 = vpack.c.bf16 %v192, %v191
      %v216 = vpack.c.bf16 %v194, %v193
      %v217 = vpack.c.bf16 %v196, %v195
      %v218 = vpack.c.bf16 %v198, %v197
      %v219 = vpack.c.bf16 %v200, %v199
      %v220 = vpack.c.bf16 %v202, %v201
      %v221 = vpack.c.bf16 %v204, %v203
      %v222 = vpack.c.bf16 %v206, %v205
      %v223 = vld [vmem:[%s1] sm:$0xf]
      %v224 = vld [vmem:[%s1 + $0x4] sm:$0xf]
      %v225 = vld [vmem:[%s1 + $0x8] sm:$0xf]
      %v226 = vld [vmem:[%s1 + $0xc] sm:$0xf]
      %v227 = vld [vmem:[%s1 + $0x10] sm:$0xf]
      %v228 = vld [vmem:[%s1 + $0x14] sm:$0xf]
      %v229 = vld [vmem:[%s1 + $0x18] sm:$0xf]
      %v230 = vld [vmem:[%s1 + $0x1c] sm:$0xf]
      %v231 = vld [vmem:[%s1 + $0x20] sm:$0xf]
      %v232 = vld [vmem:[%s1 + $0x24] sm:$0xf]
      %v233 = vld [vmem:[%s1 + $0x28] sm:$0xf]
      %v234 = vld [vmem:[%s1 + $0x2c] sm:$0xf]
      %v235 = vld [vmem:[%s2] sm:$0x1]
      %v237 = vlaneseq
      %v238 = vshrl.u32 %v237, 7
      %v239 = vsub.s32 0, %v238
      %v240 = vrot.slane %v235, %v239
      %v254 = vunpack.c.l.b16 %v223
      %v255 = vunpack.c.l.b16 %v224
      %v256 = vunpack.c.l.b16 %v225
      %v257 = vunpack.c.l.b16 %v226
      %v258 = vunpack.c.l.b16 %v227
      %v259 = vunpack.c.l.b16 %v228
      %v260 = vunpack.c.l.b16 %v229
      %v261 = vunpack.c.l.b16 %v230
      %v262 = vunpack.c.l.b16 %v231
      %v263 = vunpack.c.l.b16 %v232
      %v264 = vunpack.c.l.b16 %v233
      %v265 = vunpack.c.l.b16 %v234
      %v266 = vpack.c.b16 %v255, %v254
      %v267 = vpack.c.b16 %v257, %v256
      %v268 = vpack.c.b16 %v259, %v258
      %v269 = vpack.c.b16 %v261, %v260
      %v270 = vpack.c.b16 %v263, %v262
      %v271 = vpack.c.b16 %v265, %v264
      %vm278 = vcmask 785408
      %v280 = vsel %vm278, %v207, 0
      %v283 = vsel %vm278, %v208, 0
      %v286 = vsel %vm278, %v209, 0
      %v289 = vsel %vm278, %v210, 0
      %v292 = vsel %vm278, %v211, 0
      %v295 = vsel %vm278, %v212, 0
      %v298 = vsel %vm278, %v213, 0
      %v301 = vsel %vm278, %v214, 0
      %v304 = vsel %vm278, %v215, 0
      %v307 = vsel %vm278, %v216, 0
      %v310 = vsel %vm278, %v217, 0
      %v313 = vsel %vm278, %v218, 0
      %v316 = vsel %vm278, %v219, 0
      %v319 = vsel %vm278, %v220, 0
      %v322 = vsel %vm278, %v221, 0
      %v325 = vsel %vm278, %v222, 0
      %327 = vmatprep.subr.bf16.mxu0 0
      %328 = vmatpush1.bf16.msra.mxu0 %v266
      %329 = vmatprep.subr.bf16.mxu0 0
      %330 = vmatpush1.bf16.msra.mxu0 %v267
      %331 = vmatprep.subr.bf16.mxu0 0
      %332 = vmatpush1.bf16.msra.mxu0 %v268
      %333 = vmatprep.subr.bf16.mxu0 0
      %334 = vmatpush1.bf16.msra.mxu0 %v269
      %335 = vmatprep.subr.bf16.mxu0 0
      %336 = vmatpush1.bf16.msra.mxu0 %v270
      %337 = vmatprep.subr.bf16.mxu0 0
      %338 = vmatpush1.bf16.msra.mxu0 %v271
      %339 = vmatprep.subr.bf16.mxu0 0
      %340 = vmatpush1.bf16.msra.mxu0 0
      %341 = vmatprep.subr.bf16.mxu0 0
      %342 = vmatpush1.bf16.msra.mxu0 0
      %343 = vmatprep.subr.bf16.mxu0 0
      %344 = vmatpush1.bf16.msra.mxu0 0
      %345 = vmatprep.subr.bf16.mxu0 0
      %346 = vmatpush1.bf16.msra.mxu0 0
      %347 = vmatprep.subr.bf16.mxu0 0
      %348 = vmatpush1.bf16.msra.mxu0 0
      %349 = vmatprep.subr.bf16.mxu0 0
      %350 = vmatpush1.bf16.msra.mxu0 0
      %351 = vmatprep.subr.bf16.mxu0 0
      %352 = vmatpush1.bf16.msra.mxu0 0
      %353 = vmatprep.subr.bf16.mxu0 0
      %354 = vmatpush1.bf16.msra.mxu0 0
      %355 = vmatprep.subr.bf16.mxu0 0
      %356 = vmatpush1.bf16.msra.mxu0 0
      %357 = vmatprep.subr.bf16.mxu0 0
      %358 = vmatpush1.bf16.msra.mxu0 0
      %359 = vmatprep.mubr.bf16.mxu0 0
      %360 = vmatmul.mubr.bf16.gmra.mrb[0].mxu0 %v280
      %v361 = vpop.f32.mrb[0].mxu0
      %v362 = vadd.f32 %v240, %v361
      %v363 = vpop.f32.mrb[0].mxu0
      %v364 = vpop.f32.mrb[0].mxu0
      %v365 = vadd.f32 %v240, %v364
      %v366 = vpop.f32.mrb[0].mxu0
      %367 = vmatprep.mubr.bf16.mxu0 0
      %368 = vmatmul.mubr.bf16.gmra.mrb[0].mxu0 %v283
      %v369 = vpop.f32.mrb[0].mxu0
      %v370 = vadd.f32 %v240, %v369
      %v371 = vpop.f32.mrb[0].mxu0
      %v372 = vpop.f32.mrb[0].mxu0
      %v373 = vadd.f32 %v240, %v372
      %v374 = vpop.f32.mrb[0].mxu0
      %375 = vmatprep.mubr.bf16.mxu0 0
      %376 = vmatmul.mubr.bf16.gmra.mrb[0].mxu0 %v286
      %v377 = vpop.f32.mrb[0].mxu0
      %v378 = vadd.f32 %v240, %v377
      %v379 = vpop.f32.mrb[0].mxu0
      %v380 = vpop.f32.mrb[0].mxu0
      %v381 = vadd.f32 %v240, %v380
      %v382 = vpop.f32.mrb[0].mxu0
      %383 = vmatprep.mubr.bf16.mxu0 0
      %384 = vmatmul.mubr.bf16.gmra.mrb[0].mxu0 %v289
      %v385 = vpop.f32.mrb[0].mxu0
      %v386 = vadd.f32 %v240, %v385
      %v387 = vpop.f32.mrb[0].mxu0
      %v388 = vpop.f32.mrb[0].mxu0
      %v389 = vadd.f32 %v240, %v388
      %v390 = vpop.f32.mrb[0].mxu0
      %391 = vmatprep.mubr.bf16.mxu0 0
      %392 = vmatmul.mubr.bf16.gmra.mrb[0].mxu0 %v292
      %v393 = vpop.f32.mrb[0].mxu0
      %v394 = vadd.f32 %v240, %v393
      %v395 = vpop.f32.mrb[0].mxu0
      %v396 = vpop.f32.mrb[0].mxu0
      %v397 = vadd.f32 %v240, %v396
      %v398 = vpop.f32.mrb[0].mxu0
      %399 = vmatprep.mubr.bf16.mxu0 0
      %400 = vmatmul.mubr.bf16.gmra.mrb[0].mxu0 %v295
      %v401 = vpop.f32.mrb[0].mxu0
      %v402 = vadd.f32 %v240, %v401
      %v403 = vpop.f32.mrb[0].mxu0
      %v404 = vpop.f32.mrb[0].mxu0
      %v405 = vadd.f32 %v240, %v404
      %v406 = vpop.f32.mrb[0].mxu0
      %407 = vmatprep.mubr.bf16.mxu0 0
      %408 = vmatmul.mubr.bf16.gmra.mrb[0].mxu0 %v298
      %v409 = vpop.f32.mrb[0].mxu0
      %v410 = vadd.f32 %v240, %v409
      %v411 = vpop.f32.mrb[0].mxu0
      %v412 = vpop.f32.mrb[0].mxu0
      %v413 = vadd.f32 %v240, %v412
      %v414 = vpop.f32.mrb[0].mxu0
      %415 = vmatprep.mubr.bf16.mxu0 0
      %416 = vmatmul.mubr.bf16.gmra.mrb[0].mxu0 %v301
      %v417 = vpop.f32.mrb[0].mxu0
      %v418 = vadd.f32 %v240, %v417
      %v419 = vpop.f32.mrb[0].mxu0
      %v420 = vpop.f32.mrb[0].mxu0
      %v421 = vadd.f32 %v240, %v420
      %v422 = vpop.f32.mrb[0].mxu0
      %423 = vmatprep.mubr.bf16.mxu0 0
      %424 = vmatmul.mubr.bf16.gmra.mrb[0].mxu0 %v304
      %v425 = vpop.f32.mrb[0].mxu0
      %v426 = vadd.f32 %v240, %v425
      %v427 = vpop.f32.mrb[0].mxu0
      %v428 = vpop.f32.mrb[0].mxu0
      %v429 = vadd.f32 %v240, %v428
      %v430 = vpop.f32.mrb[0].mxu0
      %431 = vmatprep.mubr.bf16.mxu0 0
      %432 = vmatmul.mubr.bf16.gmra.mrb[0].mxu0 %v307
      %v433 = vpop.f32.mrb[0].mxu0
      %v434 = vadd.f32 %v240, %v433
      %v435 = vpop.f32.mrb[0].mxu0
      %v436 = vpop.f32.mrb[0].mxu0
      %v437 = vadd.f32 %v240, %v436
      %v438 = vpop.f32.mrb[0].mxu0
      %439 = vmatprep.mubr.bf16.mxu0 0
      %440 = vmatmul.mubr.bf16.gmra.mrb[0].mxu0 %v310
      %v441 = vpop.f32.mrb[0].mxu0
      %v442 = vadd.f32 %v240, %v441
      %v443 = vpop.f32.mrb[0].mxu0
      %v444 = vpop.f32.mrb[0].mxu0
      %v445 = vadd.f32 %v240, %v444
      %v446 = vpop.f32.mrb[0].mxu0
      %447 = vmatprep.mubr.bf16.mxu0 0
      %448 = vmatmul.mubr.bf16.gmra.mrb[0].mxu0 %v313
      %v449 = vpop.f32.mrb[0].mxu0
      %v450 = vadd.f32 %v240, %v449
      %v451 = vpop.f32.mrb[0].mxu0
      %v452 = vpop.f32.mrb[0].mxu0
      %v453 = vadd.f32 %v240, %v452
      %v454 = vpop.f32.mrb[0].mxu0
      %455 = vmatprep.mubr.bf16.mxu0 0
      %456 = vmatmul.mubr.bf16.gmra.mrb[0].mxu0 %v316
      %v457 = vpop.f32.mrb[0].mxu0
      %v458 = vadd.f32 %v240, %v457
      %v459 = vpop.f32.mrb[0].mxu0
      %v460 = vpop.f32.mrb[0].mxu0
      %v461 = vadd.f32 %v240, %v460
      %v462 = vpop.f32.mrb[0].mxu0
      %463 = vmatprep.mubr.bf16.mxu0 0
      %464 = vmatmul.mubr.bf16.gmra.mrb[0].mxu0 %v319
      %v465 = vpop.f32.mrb[0].mxu0
      %v466 = vadd.f32 %v240, %v465
      %v467 = vpop.f32.mrb[0].mxu0
      %v468 = vpop.f32.mrb[0].mxu0
      %v469 = vadd.f32 %v240, %v468
      %v470 = vpop.f32.mrb[0].mxu0
      %471 = vmatprep.mubr.bf16.mxu0 0
      %472 = vmatmul.mubr.bf16.gmra.mrb[0].mxu0 %v322
      %v473 = vpop.f32.mrb[0].mxu0
      %v474 = vadd.f32 %v240, %v473
      %v475 = vpop.f32.mrb[0].mxu0
      %v476 = vpop.f32.mrb[0].mxu0
      %v477 = vadd.f32 %v240, %v476
      %v478 = vpop.f32.mrb[0].mxu0
      %479 = vmatprep.mubr.bf16.mxu0 0
      %480 = vmatmul.mubr.bf16.gmra.mrb[0].mxu0 %v325
      %v481 = vpop.f32.mrb[0].mxu0
      %v482 = vadd.f32 %v240, %v481
      %v483 = vpop.f32.mrb[0].mxu0
      %v484 = vpop.f32.mrb[0].mxu0
      %v485 = vadd.f32 %v240, %v484
      %v486 = vpop.f32.mrb[0].mxu0
      %487 = vdwg.mxu0
      %v488 = vmax.f32 %v362, 0.0
      %v489 = vmax.f32 %v365, 0.0
      %v490 = vmax.f32 %v370, 0.0
      %v491 = vmax.f32 %v373, 0.0
      %v492 = vmax.f32 %v378, 0.0
      %v493 = vmax.f32 %v381, 0.0
      %v494 = vmax.f32 %v386, 0.0
      %v495 = vmax.f32 %v389, 0.0
      %v496 = vmax.f32 %v394, 0.0
      %v497 = vmax.f32 %v397, 0.0
      %v498 = vmax.f32 %v402, 0.0
      %v499 = vmax.f32 %v405, 0.0
      %v500 = vmax.f32 %v410, 0.0
      %v501 = vmax.f32 %v413, 0.0
      %v502 = vmax.f32 %v418, 0.0
      %v503 = vmax.f32 %v421, 0.0
      %v504 = vmax.f32 %v426, 0.0
      %v505 = vmax.f32 %v429, 0.0
      %v506 = vmax.f32 %v434, 0.0
      %v507 = vmax.f32 %v437, 0.0
      %v508 = vmax.f32 %v442, 0.0
      %v509 = vmax.f32 %v445, 0.0
      %v510 = vmax.f32 %v450, 0.0
      %v511 = vmax.f32 %v453, 0.0
      %v512 = vmax.f32 %v458, 0.0
      %v513 = vmax.f32 %v461, 0.0
      %v514 = vmax.f32 %v466, 0.0
      %v515 = vmax.f32 %v469, 0.0
      %v516 = vmax.f32 %v474, 0.0
      %v517 = vmax.f32 %v477, 0.0
      %v518 = vmax.f32 %v482, 0.0
      %v519 = vmax.f32 %v485, 0.0
      %vm520 = vcmask 392192
      %521 = vst.msk [vmem:[%s172] sm:$0xff] %vm520, %v488
      %522 = vst.msk [vmem:[%s172 + $0x8] sm:$0xff] %vm520, %v489
      %523 = vst.msk [vmem:[%s172 + $0x10] sm:$0xff] %vm520, %v490
      %524 = vst.msk [vmem:[%s172 + $0x18] sm:$0xff] %vm520, %v491
      %525 = vst.msk [vmem:[%s172 + $0x20] sm:$0xff] %vm520, %v492
      %526 = vst.msk [vmem:[%s172 + $0x28] sm:$0xff] %vm520, %v493
      %527 = vst.msk [vmem:[%s172 + $0x30] sm:$0xff] %vm520, %v494
      %528 = vst.msk [vmem:[%s172 + $0x38] sm:$0xff] %vm520, %v495
      %529 = vst.msk [vmem:[%s172 + $0x40] sm:$0xff] %vm520, %v496
      %530 = vst.msk [vmem:[%s172 + $0x48] sm:$0xff] %vm520, %v497
      %531 = vst.msk [vmem:[%s172 + $0x50] sm:$0xff] %vm520, %v498
      %532 = vst.msk [vmem:[%s172 + $0x58] sm:$0xff] %vm520, %v499
      %533 = vst.msk [vmem:[%s172 + $0x60] sm:$0xff] %vm520, %v500
      %534 = vst.msk [vmem:[%s172 + $0x68] sm:$0xff] %vm520, %v501
      %535 = vst.msk [vmem:[%s172 + $0x70] sm:$0xff] %vm520, %v502
      %536 = vst.msk [vmem:[%s172 + $0x78] sm:$0xff] %vm520, %v503
      %537 = vst.msk [vmem:[%s172 + $0x80] sm:$0xff] %vm520, %v504
      %538 = vst.msk [vmem:[%s172 + $0x88] sm:$0xff] %vm520, %v505
      %539 = vst.msk [vmem:[%s172 + $0x90] sm:$0xff] %vm520, %v506
      %540 = vst.msk [vmem:[%s172 + $0x98] sm:$0xff] %vm520, %v507
      %541 = vst.msk [vmem:[%s172 + $0xa0] sm:$0xff] %vm520, %v508
      %542 = vst.msk [vmem:[%s172 + $0xa8] sm:$0xff] %vm520, %v509
      %543 = vst.msk [vmem:[%s172 + $0xb0] sm:$0xff] %vm520, %v510
      %544 = vst.msk [vmem:[%s172 + $0xb8] sm:$0xff] %vm520, %v511
      %545 = vst.msk [vmem:[%s172 + $0xc0] sm:$0xff] %vm520, %v512
      %546 = vst.msk [vmem:[%s172 + $0xc8] sm:$0xff] %vm520, %v513
      %547 = vst.msk [vmem:[%s172 + $0xd0] sm:$0xff] %vm520, %v514
      %548 = vst.msk [vmem:[%s172 + $0xd8] sm:$0xff] %vm520, %v515
      %549 = vst.msk [vmem:[%s172 + $0xe0] sm:$0xff] %vm520, %v516
      %550 = vst.msk [vmem:[%s172 + $0xe8] sm:$0xff] %vm520, %v517
      %551 = vst.msk [vmem:[%s172 + $0xf0] sm:$0xff] %vm520, %v518
      %552 = vst.msk [vmem:[%s172 + $0xf8] sm:$0xff] %vm520, %v519
      %s553 = smul.u32 32, %s14
      %p554 = scmp.lt.s32.totalorder %s553, 63
      %s555 = scalar_select %p554, %s553, 63
      %s556 = smul.addr %s555, 8
      %s557 = scalar_lea.vmem %s3, %s556
      // Predicated region
      $region33: #{tpu_custom_call.1} parent=31 // pred_check
        %p558 = pneg %p100
      $region34: #{tpu_custom_call.1} parent=31 // pred_check_branch
        %560 = sbr.rel (%p558) target = $region36
      $region35: #{tpu_custom_call.1} parent=31 // pred_region
        %s561 = smul.u32 32, %s14
      $region36: #{tpu_custom_call.1} parent=31 // pred_fallthru
        _
    $region32: #{tpu_custom_call.1} parent=5 // pred_fallthru
      _
    %p562 = scmp.le.s32.totalorder 2, %s9
    // Predicated region
    $region37: #{tpu_custom_call.1} parent=5 // pred_check
      %p563 = pneg %p562
    $region38: #{tpu_custom_call.1} parent=5 // pred_check_branch
      %565 = sbr.rel (%p563) target = $region40
    $region39: #{tpu_custom_call.1} parent=5 // pred_region
      %s566 = ssub.s32 %s9, 2
      // Predicated region
      $region41: #{tpu_custom_call.1} parent=39 // pred_check
        %p567 = pneg %p106
      $region42: #{tpu_custom_call.1} parent=39 // pred_check_branch
        %569 = sbr.rel (%p567) target = $region44
      $region43: #{tpu_custom_call.1} parent=39 // pred_region
        %s570 = smul.u32 32, %s15
        %p571 = scmp.lt.s32.totalorder %s570, 63
        %s572 = scalar_select %p571, %s570, 63
        %s573 = smul.addr %s572, 8
        %s574 = scalar_lea.vmem %s3, %s573
      $region44: #{tpu_custom_call.1} parent=39 // pred_fallthru
        _
    $region40: #{tpu_custom_call.1} parent=5 // pred_fallthru
      _
  $region6: #{tpu_custom_call.1} parent=0 // loop_footer
    %s13 = sadd.s32 1, %s9
  $region7: #{tpu_custom_call.1} parent=0 // loop_footer_branch
    %8 = sbr.rel target = $region3
  $region8: #{tpu_custom_call.1} parent=0 // loop_exit
    _

</llo_original>
